<compile_context>
chip_gen: v5e
topology: v5e:2x2
jax: 0.10.0
libtpu: 0.0.40
codegen_flags: <defaults>
</compile_context>

<pallas_src>
import functools

import jax
import jax.numpy as jnp
from jax.experimental import pallas as pl
from jax.experimental.pallas import tpu as pltpu


_LANE = 128
_SUBLANE = 8


# ----------------------------- Pallas kernel -------------------------------

def _fused_tuple_kernel(x0_ref, wb_ref, x1_ref, out_ref, *,
                        n_in, n_x0_rows, x0_rows_pad, n_relu_rows):
    """One fused kernel, one lane-dense output slab.

    out_ref[:n_x0_rows, :]                        <- x0 @ W + b (OUT lane-padded)
    out_ref[x0_rows_pad:x0_rows_pad+n_relu_rows]  <- relu(x1_flat)
    """
    # Branch 0: Linear (MXU, f32 accumulation). Weight slab carries the bias
    # in its last row, so a single operand feeds both matmul and bias add.
    w = wb_ref[0:n_in, :]                    # (IN, LANE)
    b = wb_ref[n_in:n_in + 1, :]             # (1, LANE)
    acc = jnp.dot(x0_ref[...], w, preferred_element_type=jnp.float32)
    out_ref[0:n_x0_rows, :] = (acc + b).astype(out_ref.dtype)
    # Rows [n_x0_rows, x0_rows_pad) (if any) are alignment padding and are
    # never read back — leaving them unwritten is fine.

    # Branch 1: ReLU (VPU) — co-issues as free filler next to the MXU drain.
    out_ref[x0_rows_pad:x0_rows_pad + n_relu_rows, :] = jnp.maximum(
        x1_ref[...], 0.0).astype(out_ref.dtype)


# ----------------------------- JAX wrapper ----------------------------------

def _fused_pallas(x0, wb, x1_flat, *, x0_rows_pad, n_in, out_dim):
    """Single fused, grid-less pallas_call producing one packed output slab."""
    n_x0_rows = x0.shape[0]
    n_relu_rows, lane = x1_flat.shape
    slab_rows = x0_rows_pad + n_relu_rows

    kernel = functools.partial(
        _fused_tuple_kernel,
        n_in=n_in,
        n_x0_rows=n_x0_rows,
        x0_rows_pad=x0_rows_pad,
        n_relu_rows=n_relu_rows,
    )

    vmem = pl.BlockSpec(memory_space=pltpu.MemorySpace.VMEM)
    itemsize = jnp.dtype(x0.dtype).itemsize
    cost = pl.CostEstimate(
        flops=2 * n_x0_rows * n_in * out_dim + n_relu_rows * lane,
        transcendentals=0,
        bytes_accessed=(x0.size + wb.size + x1_flat.size
                        + slab_rows * lane) * itemsize,
    )

    return pl.pallas_call(
        kernel,
        out_shape=jax.ShapeDtypeStruct((slab_rows, lane), x0.dtype),
        in_specs=[vmem, vmem, vmem],
        out_specs=vmem,
        cost_estimate=cost,
    )(x0, wb, x1_flat)


class TupleApply:
    """JAX/Pallas port of the PyTorch TupleApply container, specialized to
    mods = (Linear(IN->OUT), ReLU) with a fused single-kernel forward.

    forward(x0, x1) -> (Linear(x0), ReLU(x1))   — same tuple semantics as
    `tuple(mod(x) for mod, x in zip(mods, t_args))`.
    """

    def __init__(self, w_t, b):
        in_dim, out_dim = w_t.shape
        # Lane width of the shared output slab: at least 128, and wide enough
        # to hold OUT lane-padded to a multiple of 128.
        lane = max(_LANE, -(-out_dim // _LANE) * _LANE)

        # Fold bias into the weight slab: rows [0, IN) = W_t (lane-padded),
        # row IN = bias (lane-padded).  One DMA descriptor instead of two.
        wb = jnp.zeros((in_dim + 1, lane), dtype=w_t.dtype)
        wb = wb.at[:in_dim, :out_dim].set(w_t)
        wb = wb.at[in_dim, :out_dim].set(b)

        self.wb = wb
        self.n_in = in_dim
        self.out_dim = out_dim
        self.lane = lane
        self._fwd = jax.jit(self._forward)

    def _forward(self, x0, x1):
        batch = x0.shape[0]
        # y0 occupies the first rows of the slab; ReLU rows start at a
        # sublane-aligned offset so its stores stay full-tile.
        x0_rows_pad = -(-batch // _SUBLANE) * _SUBLANE

        # Lane-dense flatten of the elementwise operand (pure layout glue):
        # always pad to a multiple of the slab lane width so the store path
        # is never masked sub-128-lane.
        x1_1d = x1.reshape(-1)
        n = x1_1d.shape[0]
        n_pad = -(-n // self.lane) * self.lane
        if n_pad != n:
            x1_1d = jnp.pad(x1_1d, (0, n_pad - n))
        x1_flat = x1_1d.reshape(-1, self.lane)
        n_relu_rows = x1_flat.shape[0]

        slab = _fused_pallas(x0, self.wb, x1_flat,
                             x0_rows_pad=x0_rows_pad,
                             n_in=self.n_in,
                             out_dim=self.out_dim)

        y0 = slab[:batch, :self.out_dim]
        y1 = slab[x0_rows_pad:x0_rows_pad + n_relu_rows, :].reshape(-1)[:n]
        return y0, y1.reshape(x1.shape)

    def __call__(self, *t_args):
        return self._fwd(*t_args)


# ----------------------------- main ----------------------------------------

if __name__ == "__main__":
    key = jax.random.PRNGKey(0)
    k_x0, k_x1, k_w, k_b = jax.random.split(key, 4)

    B0, IN, OUT = 8, 32, 64
    N, C, H, W = 2, 4, 16, 16

    # Inputs for the tuple.
    x0 = jax.random.normal(k_x0, (B0, IN), dtype=jnp.float32)
    x1 = jax.random.normal(k_x1, (N, C, H, W), dtype=jnp.float32)  # NCHW

    # Deterministic Linear params (PyTorch convention: weight (OUT, IN)).
    bound = 1.0 / jnp.sqrt(IN)
    w = jax.random.uniform(k_w, (OUT, IN), minval=-bound, maxval=bound,
                           dtype=jnp.float32)
    b = jax.random.uniform(k_b, (OUT,), minval=-bound, maxval=bound,
                           dtype=jnp.float32)
    w_t = jnp.transpose(w)  # (IN, OUT) so the kernel computes x @ W_t + b

    tuple_apply = TupleApply(w_t, b)

    y0, y1 = tuple_apply(x0, x1)
    y0 = jax.block_until_ready(y0)
    y1 = jax.block_until_ready(y1)

    # Sanity-check against plain-JAX reference.
    ref0 = x0 @ w_t + b
    ref1 = jnp.maximum(x1, 0.0)
    assert y0.shape == (B0, OUT) and y1.shape == (N, C, H, W)
    assert jnp.allclose(y0, ref0, atol=1e-5, rtol=1e-5)
    assert jnp.allclose(y1, ref1, atol=1e-6, rtol=1e-6)

    print("KERNEL_OK")
</pallas_src>

<mosaic_0001>
module attributes {stable_mosaic.version = 11 : i64} {
  func.func @_fused_tuple_kernel(%arg0: memref<8x32xf32, #tpu.memory_space<vmem>>, %arg1: memref<33x128xf32, #tpu.memory_space<vmem>>, %arg2: memref<16x128xf32, #tpu.memory_space<vmem>>, %arg3: memref<24x128xf32, #tpu.memory_space<vmem>>) attributes {dimension_semantics = [], scalar_prefetch = 0 : i64, scratch_operands = 0 : i64, tpu.core_type = #tpu.core_type<tc>} {
    %c0 = arith.constant 0 : index
    %c0_0 = arith.constant 0 : index
    %0 = vector.load %arg1[%c0, %c0_0] : memref<33x128xf32, #tpu.memory_space<vmem>>, vector<32x128xf32>
    %c32 = arith.constant 32 : index
    %c0_1 = arith.constant 0 : index
    %1 = vector.load %arg1[%c32, %c0_1] : memref<33x128xf32, #tpu.memory_space<vmem>>, vector<1x128xf32>
    %c0_2 = arith.constant 0 : index
    %c0_3 = arith.constant 0 : index
    %2 = vector.load %arg0[%c0_2, %c0_3] : memref<8x32xf32, #tpu.memory_space<vmem>>, vector<8x32xf32>
    %cst = arith.constant dense<0.000000e+00> : vector<8x128xf32>
    %3 = tpu.matmul %2, %0, %cst {dimension_numbers = #tpu.dot_dimension_numbers<[1], [0], [0], [1], [0, 0, 1, 1], [], []>} : vector<8x32xf32>, vector<32x128xf32>, vector<8x128xf32> -> vector<8x128xf32>
    %4 = vector.broadcast %1 : vector<1x128xf32> to vector<8x128xf32>
    %5 = arith.addf %3, %4 : vector<8x128xf32>
    %c0_4 = arith.constant 0 : index
    %c0_5 = arith.constant 0 : index
    %6 = vector.load %arg3[%c0_4, %c0_5] : memref<24x128xf32, #tpu.memory_space<vmem>>, vector<8x128xf32>
    tpu.vector_store %arg3[%c0_4, %c0_5], %5 {strides = array<i32>} : memref<24x128xf32, #tpu.memory_space<vmem>>, vector<8x128xf32>,
    %c0_6 = arith.constant 0 : index
    %c0_7 = arith.constant 0 : index
    %7 = vector.load %arg2[%c0_6, %c0_7] : memref<16x128xf32, #tpu.memory_space<vmem>>, vector<16x128xf32>
    %cst_8 = arith.constant 0.000000e+00 : f32
    %8 = vector.broadcast %cst_8 : f32 to vector<16x128xf32>
    %9 = arith.maximumf %7, %8 : vector<16x128xf32>
    %c8 = arith.constant 8 : index
    %c0_9 = arith.constant 0 : index
    %10 = vector.load %arg3[%c8, %c0_9] : memref<24x128xf32, #tpu.memory_space<vmem>>, vector<16x128xf32>
    tpu.vector_store %arg3[%c8, %c0_9], %9 {strides = array<i32>} : memref<24x128xf32, #tpu.memory_space<vmem>>, vector<16x128xf32>,
    return
  }
}

</mosaic_0001>

<llo_original>
// kernel: _forward.1
$region0: #{_forward.1}
  #allocation0 [shape = 'u32[]', space=smem, size = 0x4, offset = 0x4, fixed_abs, tag = 'smem constant byte address 0x4 - core index']
  #allocation1 [shape = 'u32[72,128]{1,0:T(1,128)}', space=vmem, size = 0x9000, scoped, tag = 'internal scratch']
  %s0 = inlined_call_operand.vmem [shape: f32[8,32], index: 0, kind: input, shape index: {}]
  %s1 = inlined_call_operand.vmem [shape: f32[33,128], index: 1, kind: input, shape index: {}]
  %s2 = inlined_call_operand.vmem [shape: f32[16,128], index: 2, kind: input, shape index: {}]
  %s3 = inlined_call_operand.vmem [shape: f32[24,128], index: 3, kind: output, shape index: {}]
  %s4 = sld [smem:[#allocation0]]
  $region22: #{_forward.1} parent=0
    _
  %s6 = ssub.s32 1, %s4
  %s7 = scalar_select 0, %s6, %s4
  // Predicated region
  $region2: #{_forward.1} parent=0 // pred_check
    _
  $region3: #{_forward.1} parent=0 // pred_check_branch
    %9 = sbr.rel (0) target = $region5
  $region4: #{_forward.1} parent=0 // pred_region
    _
  $region5: #{_forward.1} parent=0 // pred_fallthru
    _
  // Predicated region
  $region6: #{_forward.1} parent=0 // pred_check
    _
  $region7: #{_forward.1} parent=0 // pred_check_branch
    %11 = sbr.rel (0) target = $region9
  $region8: #{_forward.1} parent=0 // pred_region
    _
  $region9: #{_forward.1} parent=0 // pred_fallthru
    _
  // Predicated region
  $region10: #{_forward.1} parent=0 // pred_check
    _
  $region11: #{_forward.1} parent=0 // pred_check_branch
    %13 = sbr.rel (0) target = $region13
  $region12: #{_forward.1} parent=0 // pred_region
    _
  $region13: #{_forward.1} parent=0 // pred_fallthru
    _
  %v14 = vld [vmem:[%s1] sm:$0xff]
  %v15 = vld [vmem:[%s1 + $0x8] sm:$0xff]
  %v16 = vld [vmem:[%s1 + $0x10] sm:$0xff]
  %v17 = vld [vmem:[%s1 + $0x18] sm:$0xff]
  %v18 = vld [vmem:[%s1 + $0x20] sm:$0x1]
  %v19 = vld [vmem:[%s0] sm:$0xff]
  %v20 = vperm.slane %v18, 0
  %vm21 = vcmask 261120
  %v23 = vsel %vm21, %v19, 0
  %25 = vmatpush.msra.mxu0 0.0
  %26 = vmatpush.msra.mxu0 0.0
  %27 = vmatpush.msra.mxu0 0.0
  %28 = vmatpush.msra.mxu0 0.0
  %29 = vmatpush.msra.mxu0 0.0
  %30 = vmatpush.msra.mxu0 0.0
  %31 = vmatpush.msra.mxu0 0.0
  %32 = vmatpush.msra.mxu0 0.0
  %33 = vmatpush.msra.mxu0 0.0
  %34 = vmatpush.msra.mxu0 0.0
  %35 = vmatpush.msra.mxu0 0.0
  %36 = vmatpush.msra.mxu0 0.0
  %37 = vmatpush.msra.mxu0 %v17
  %38 = vmatpush.msra.mxu0 %v16
  %39 = vmatpush.msra.mxu0 %v15
  %40 = vmatpush.msra.mxu0 %v14
  %41 = vmatmul.f32.gmra.mxu0 %v23
  %v42 = vpop.f32.mrf.mxu0
  %v43 = vadd.f32 %v20, %v42
  %44 = vdwg.mxu0
  %45 = vst [vmem:[%s3] sm:$0xff] %v43
  %v46 = vld [vmem:[%s2] sm:$0xff]
  %v47 = vld [vmem:[%s2 + $0x8] sm:$0xff]
  %v48 = vmax.f32 %v46, 0.0
  %v49 = vmax.f32 %v47, 0.0
  %50 = vst [vmem:[%s3 + $0x8] sm:$0xff] %v48
  %51 = vst [vmem:[%s3 + $0x10] sm:$0xff] %v49
  // Predicated region
  $region14: #{_forward.1} parent=0 // pred_check
    _
  $region15: #{_forward.1} parent=0 // pred_check_branch
    %53 = sbr.rel (0) target = $region17
  $region16: #{_forward.1} parent=0 // pred_region
    _
  $region17: #{_forward.1} parent=0 // pred_fallthru
    _
  // Predicated region
  $region18: #{_forward.1} parent=0 // pred_check
    _
  $region19: #{_forward.1} parent=0 // pred_check_branch
    %55 = sbr.rel (0) target = $region21
  $region20: #{_forward.1} parent=0 // pred_region
    _
  $region21: #{_forward.1} parent=0 // pred_fallthru
    _

</llo_original>
